<compile_context>
chip_gen: v7x
topology: tpu7x:2x2x1
jax: 0.10.0
libtpu: 0.0.40
codegen_flags: <defaults>
</compile_context>

<pallas_src>
import functools

import numpy as np
import jax
import jax.numpy as jnp
from jax import lax
from jax.experimental import pallas as pl
from jax.experimental.pallas import tpu as pltpu


def fused_netwrapper_kernel(lhs_ref, wband_ref, bconv_ref, poolw_ref, poolb_ref,
                            w1_ref, b1_ref, g_ref, beta_ref, w2_ref, b2_ref,
                            rep_ref, proj_ref, *, batch, feat, inv_hw, eps):
    """Conv3x3 (single banded matmul) + bias/ReLU + global-avg-pool + BYOL projector MLP.

    lhs_ref   : (Mr, Kcp)  bf16  rows=(b, h_out); lanes=(kh, w_pad, c) -- KS row-shifted slabs
                                  concatenated wrapper-side so the conv is ONE matmul.
    wband_ref : (Kcp, WFp) bf16  block-Toeplitz conv weights, bands stacked along K.
    bconv_ref : (1, WFp)   f32   conv bias tiled over w.
    poolw_ref : (WFp, Fp)  bf16  0/1 selector summing lane groups of size F (sum over w).
    poolb_ref : (Bp, Mr)   bf16  0/1 selector summing each batch's H rows (sum over h).
    w1/b1/gamma/beta/w2/b2       projector params, unpadded (f32).
    rep_ref   : (Bp, Fp)   f32   pooled representation (lane-dense, unmasked stores).
    proj_ref  : (Bp, P)    f32   projection (single masked vreg store; padding not worth it).
    """
    f32, bf16 = jnp.float32, jnp.bfloat16

    # --- conv as ONE fused banded matmul (bf16 operands, f32 accumulation on the MXU) ---
    y = jnp.dot(lhs_ref[...], wband_ref[...], preferred_element_type=f32)
    y = jnp.maximum(y + bconv_ref[...], 0.0)                                   # (Mr, W*F)

    # --- global average pool = two lane-dense MXU matmuls (0/1 selectors, exact in bf16) ---
    pw = jnp.dot(y.astype(bf16), poolw_ref[...], preferred_element_type=f32)   # sum over w
    rep = jnp.dot(poolb_ref[...], pw.astype(bf16), preferred_element_type=f32) # sum over h
    rep = rep * inv_hw                                                         # mean, f32 scale
    rep_ref[...] = rep                                  # rows >= B and lanes >= F are exactly 0

    # --- projector MLP: Linear -> BatchNorm1d (training-mode batch stats) -> ReLU -> Linear ---
    # First Linear + BN kept in f32: batch=2 BN normalizes by a tiny per-feature std, so bf16
    # rounding of h1 could flip (h - mean) signs; these tensors are (8, 64) -- negligible cost.
    h1 = jnp.dot(rep[:, :feat], w1_ref[...], preferred_element_type=f32) + b1_ref[...]
    h1v = h1[:batch]                                    # static slice: only the real batch rows
    inv_b = 1.0 / batch
    mean = jnp.sum(h1v, axis=0, keepdims=True) * inv_b
    cv = h1v - mean
    var = jnp.sum(cv * cv, axis=0, keepdims=True) * inv_b          # biased var (BN training mode)
    hn = (h1 - mean) * lax.rsqrt(var + eps) * g_ref[...] + beta_ref[...]
    a = jnp.maximum(hn, 0.0)
    proj_ref[...] = (jnp.dot(a.astype(bf16), w2_ref[...].astype(bf16),
                             preferred_element_type=f32) + b2_ref[...])


def net_wrapper_forward(x, params):
    """x: (B, C, H, W) float32 (NCHW, like PyTorch). Returns (projection, representation)."""
    B, C, H, W = x.shape
    conv_w = params["conv_w"]                      # (F, C, 3, 3), PyTorch OIHW
    F_, _, KS, _ = conv_w.shape
    HID = params["w1"].shape[1]
    P = params["w2"].shape[1]
    pad = KS // 2
    Hp, Wp = H + 2 * pad, W + 2 * pad
    f32, bf16 = jnp.float32, jnp.bfloat16

    LANE, SUB = 128, 8
    rup = lambda v, m: -(-v // m) * m
    Kc = KS * Wp * C                               # fused conv contraction (kh, w_pad, c)
    Kcp = rup(Kc, LANE)
    WF = W * F_                                    # conv output lanes (w_out, f)
    WFp = rup(WF, LANE)
    Fp = rup(F_, LANE)
    Bp = rup(B, SUB)
    Mr = rup(B * H, SUB)                           # conv output rows (b, h_out): valid rows only

    # ---- activation slab: KS height-shifted windows concatenated along lanes, bf16 ----
    xb = jnp.transpose(x.astype(bf16), (0, 2, 3, 1))                           # NHWC
    xp = jnp.pad(xb, ((0, 0), (pad, pad), (pad, pad), (0, 0)))                 # (B, Hp, Wp, C)
    lhs = jnp.stack([xp[:, kh:kh + H] for kh in range(KS)], axis=2)            # (B, H, KS, Wp, C)
    lhs = jnp.pad(lhs.reshape(B * H, Kc), ((0, Mr - B * H), (0, Kcp - Kc)))    # (Mr, Kcp)

    # ---- block-Toeplitz conv weight: one einsum against a constant 0/1 scatter tensor ----
    # toep[kw, w_in, w_out] = 1 iff w_in - w_out == kw   (numpy -> baked-in compile-time constant)
    toep = (np.arange(Wp)[:, None] - np.arange(W)[None, :]
            == np.arange(KS)[:, None, None]).astype(np.float32)                # (KS, Wp, W)
    toep = jnp.asarray(toep, dtype=bf16)
    # band[(kh, w_in, c), (w_out, f)] = conv_w[f, c, kh, w_in - w_out]; exact in bf16 (0/1 selector).
    band = jnp.einsum("kxy,fchk->hxcyf", toep, conv_w.astype(bf16))            # (KS, Wp, C, W, F)
    wband = jnp.pad(band.reshape(Kc, WF), ((0, Kcp - Kc), (0, WFp - WF)))      # (Kcp, WFp)

    bconv = jnp.tile(params["conv_b"].astype(f32), W)[None, :]                 # (1, W*F)
    if WFp > WF:
        bconv = jnp.pad(bconv, ((0, 0), (0, WFp - WF)))

    # ---- pooling selectors: pure numpy constants (no runtime XLA ops; 0/1 exact in bf16) ----
    poolw = np.zeros((WFp, Fp), np.float32)
    poolw[np.arange(WF), np.tile(np.arange(F_), W)] = 1.0                      # sum over w
    poolb = np.zeros((Bp, Mr), np.float32)
    rows = np.arange(B * H)
    poolb[rows // H, rows] = 1.0                                               # sum over h, per b
    poolw = jnp.asarray(poolw, dtype=bf16)
    poolb = jnp.asarray(poolb, dtype=bf16)

    # ---- projector params: passed unpadded; biases reshaped to (1, n) rows (free) ----
    w1 = params["w1"].astype(f32)
    b1 = params["b1"].astype(f32)[None, :]
    g = params["gamma"].astype(f32)[None, :]
    bt = params["beta"].astype(f32)[None, :]
    w2 = params["w2"].astype(f32)
    b2 = params["b2"].astype(f32)[None, :]

    operands = (lhs, wband, bconv, poolw, poolb, w1, b1, g, bt, w2, b2)
    out_shapes = (jax.ShapeDtypeStruct((Bp, Fp), f32),     # representation (lane-dense)
                  jax.ShapeDtypeStruct((Bp, P), f32))      # projection

    # VMEM budget from actual buffer sizes (+ generous headroom), not a blanket number.
    nbytes = sum(int(np.prod(a.shape)) * a.dtype.itemsize for a in operands)
    nbytes += sum(int(np.prod(s.shape)) * s.dtype.itemsize for s in out_shapes)
    vmem_limit = int(max(4 * 1024 * 1024, 4 * nbytes))

    vmem = pl.BlockSpec(memory_space=pltpu.MemorySpace.VMEM)
    rep_pad, proj_pad = pl.pallas_call(
        functools.partial(fused_netwrapper_kernel,
                          batch=B, feat=F_, inv_hw=1.0 / (H * W), eps=1e-5),
        out_shape=out_shapes,
        in_specs=[vmem] * len(operands),
        out_specs=(vmem, vmem),
        compiler_params=pltpu.CompilerParams(vmem_limit_bytes=vmem_limit),
    )(*operands)

    # representation == flatten(hook output of layer=-2); slice padding away.
    # TODO(synk): the backbone's final classifier output (`_ = self.net(x)`) is discarded by
    # NetWrapper, so that dead linear layer is intentionally not computed here.
    return proj_pad[:B, :], rep_pad[:B, :F_]


# ---------- pure-JAX reference (for a lightweight self-check) ----------
def reference_representation(x, params):
    y = lax.conv_general_dilated(
        x.astype(jnp.float32), params["conv_w"].astype(jnp.float32),
        window_strides=(1, 1), padding="SAME",
        dimension_numbers=("NCHW", "OIHW", "NCHW"),
        precision=lax.Precision.HIGHEST)
    y = jnp.maximum(y + params["conv_b"][None, :, None, None], 0.0)
    return jnp.mean(y, axis=(2, 3))


def reference_projection(rep, params):
    h = jnp.dot(rep, params["w1"], precision=lax.Precision.HIGHEST) + params["b1"]
    mean = jnp.mean(h, axis=0, keepdims=True)
    var = jnp.mean((h - mean) ** 2, axis=0, keepdims=True)
    hn = (h - mean) * lax.rsqrt(var + 1e-5) * params["gamma"] + params["beta"]
    a = jnp.maximum(hn, 0.0)
    return jnp.dot(a, params["w2"], precision=lax.Precision.HIGHEST) + params["b2"]


if __name__ == "__main__":
    # small shapes: batch=2, channels=4, spatial=16x16, backbone features=32,
    # projection_hidden_size=64, projection_size=16
    B, C, H, W = 2, 4, 16, 16
    F_, HID, P = 32, 64, 16

    key = jax.random.PRNGKey(0)
    kx, k1, k2, k3, k4, k5, k6 = jax.random.split(key, 7)
    x = jax.random.normal(kx, (B, C, H, W), jnp.float32)

    params = dict(
        conv_w=0.1 * jax.random.normal(k1, (F_, C, 3, 3), jnp.float32),
        conv_b=0.1 * jax.random.normal(k2, (F_,), jnp.float32),
        w1=0.1 * jax.random.normal(k3, (F_, HID), jnp.float32),
        b1=0.1 * jax.random.normal(k4, (HID,), jnp.float32),
        gamma=jnp.ones((HID,), jnp.float32),   # BatchNorm1d affine defaults
        beta=jnp.zeros((HID,), jnp.float32),
        w2=0.1 * jax.random.normal(k5, (HID, P), jnp.float32),
        b2=0.1 * jax.random.normal(k6, (P,), jnp.float32),
    )

    projection, representation = jax.jit(net_wrapper_forward)(x, params)
    jax.block_until_ready((projection, representation))
    assert projection.shape == (B, P)
    assert representation.shape == (B, F_)

    # Self-check: representation against a full pure-JAX f32 reference (tolerance covers bf16
    # conv/pool operands); projection against a reference driven by the kernel's own
    # representation, so the B=2 batch-norm (ill-conditioned by construction) does not amplify
    # conv rounding.  The kernel keeps the first Linear + BN in f32 to match the reference path.
    rep_ref = reference_representation(x, params)
    proj_ref = reference_projection(representation, params)
    assert jnp.max(jnp.abs(representation - rep_ref)) < 2e-2
    assert jnp.max(jnp.abs(projection - proj_ref)) < 5e-2

    print("KERNEL_OK")
</pallas_src>

<mosaic_0001>
module attributes {stable_mosaic.version = 11 : i64} {
  func.func @fused_netwrapper_kernel(%arg0: memref<32x256xbf16, #tpu.memory_space<vmem>>, %arg1: memref<256x512xbf16, #tpu.memory_space<vmem>>, %arg2: memref<1x512xf32, #tpu.memory_space<vmem>>, %arg3: memref<512x128xbf16, #tpu.memory_space<vmem>>, %arg4: memref<8x32xbf16, #tpu.memory_space<vmem>>, %arg5: memref<32x64xf32, #tpu.memory_space<vmem>>, %arg6: memref<1x64xf32, #tpu.memory_space<vmem>>, %arg7: memref<1x64xf32, #tpu.memory_space<vmem>>, %arg8: memref<1x64xf32, #tpu.memory_space<vmem>>, %arg9: memref<64x16xf32, #tpu.memory_space<vmem>>, %arg10: memref<1x16xf32, #tpu.memory_space<vmem>>, %arg11: memref<8x128xf32, #tpu.memory_space<vmem>>, %arg12: memref<8x16xf32, #tpu.memory_space<vmem>>) attributes {dimension_semantics = [], scalar_prefetch = 0 : i64, scratch_operands = 0 : i64, tpu.core_type = #tpu.core_type<tc>} {
    %c0 = arith.constant 0 : index
    %c0_0 = arith.constant 0 : index
    %0 = vector.load %arg0[%c0, %c0_0] : memref<32x256xbf16, #tpu.memory_space<vmem>>, vector<32x256xbf16>
    %c0_1 = arith.constant 0 : index
    %c0_2 = arith.constant 0 : index
    %1 = vector.load %arg1[%c0_1, %c0_2] : memref<256x512xbf16, #tpu.memory_space<vmem>>, vector<256x512xbf16>
    %cst = arith.constant dense<0.000000e+00> : vector<32x512xf32>
    %2 = tpu.matmul %0, %1, %cst {dimension_numbers = #tpu.dot_dimension_numbers<[1], [0], [0], [1], [0, 0, 1, 1], [], []>} : vector<32x256xbf16>, vector<256x512xbf16>, vector<32x512xf32> -> vector<32x512xf32>
    %c0_3 = arith.constant 0 : index
    %c0_4 = arith.constant 0 : index
    %3 = vector.load %arg2[%c0_3, %c0_4] : memref<1x512xf32, #tpu.memory_space<vmem>>, vector<1x512xf32>
    %4 = vector.broadcast %3 : vector<1x512xf32> to vector<32x512xf32>
    %5 = arith.addf %2, %4 : vector<32x512xf32>
    %cst_5 = arith.constant 0.000000e+00 : f32
    %6 = vector.broadcast %cst_5 : f32 to vector<32x512xf32>
    %7 = arith.maximumf %5, %6 : vector<32x512xf32>
    %8 = arith.truncf %7 : vector<32x512xf32> to vector<32x512xbf16>
    %c0_6 = arith.constant 0 : index
    %c0_7 = arith.constant 0 : index
    %9 = vector.load %arg3[%c0_6, %c0_7] : memref<512x128xbf16, #tpu.memory_space<vmem>>, vector<512x128xbf16>
    %cst_8 = arith.constant dense<0.000000e+00> : vector<32x128xf32>
    %10 = tpu.matmul %8, %9, %cst_8 {dimension_numbers = #tpu.dot_dimension_numbers<[1], [0], [0], [1], [0, 0, 1, 1], [], []>} : vector<32x512xbf16>, vector<512x128xbf16>, vector<32x128xf32> -> vector<32x128xf32>
    %c0_9 = arith.constant 0 : index
    %c0_10 = arith.constant 0 : index
    %11 = vector.load %arg4[%c0_9, %c0_10] : memref<8x32xbf16, #tpu.memory_space<vmem>>, vector<8x32xbf16>
    %12 = arith.truncf %10 : vector<32x128xf32> to vector<32x128xbf16>
    %cst_11 = arith.constant dense<0.000000e+00> : vector<8x128xf32>
    %13 = tpu.matmul %11, %12, %cst_11 {dimension_numbers = #tpu.dot_dimension_numbers<[1], [0], [0], [1], [0, 0, 1, 1], [], []>} : vector<8x32xbf16>, vector<32x128xbf16>, vector<8x128xf32> -> vector<8x128xf32>
    %cst_12 = arith.constant 3.906250e-03 : f32
    %14 = vector.broadcast %cst_12 : f32 to vector<8x128xf32>
    %15 = arith.mulf %13, %14 : vector<8x128xf32>
    %c0_13 = arith.constant 0 : index
    %c0_14 = arith.constant 0 : index
    %16 = vector.load %arg11[%c0_13, %c0_14] : memref<8x128xf32, #tpu.memory_space<vmem>>, vector<8x128xf32>
    tpu.vector_store %arg11[%c0_13, %c0_14], %15 {strides = array<i32>} : memref<8x128xf32, #tpu.memory_space<vmem>>, vector<8x128xf32>,
    %17 = vector.extract_strided_slice %15 {offsets = [0, 0], sizes = [8, 32], strides = [1, 1]} : vector<8x128xf32> to vector<8x32xf32>
    %c0_15 = arith.constant 0 : index
    %c0_16 = arith.constant 0 : index
    %18 = vector.load %arg5[%c0_15, %c0_16] : memref<32x64xf32, #tpu.memory_space<vmem>>, vector<32x64xf32>
    %cst_17 = arith.constant dense<0.000000e+00> : vector<8x64xf32>
    %19 = tpu.matmul %17, %18, %cst_17 {dimension_numbers = #tpu.dot_dimension_numbers<[1], [0], [0], [1], [0, 0, 1, 1], [], []>} : vector<8x32xf32>, vector<32x64xf32>, vector<8x64xf32> -> vector<8x64xf32>
    %c0_18 = arith.constant 0 : index
    %c0_19 = arith.constant 0 : index
    %20 = vector.load %arg6[%c0_18, %c0_19] : memref<1x64xf32, #tpu.memory_space<vmem>>, vector<1x64xf32>
    %21 = vector.broadcast %20 : vector<1x64xf32> to vector<8x64xf32>
    %22 = arith.addf %19, %21 : vector<8x64xf32>
    %23 = vector.extract_strided_slice %22 {offsets = [0, 0], sizes = [2, 64], strides = [1, 1]} : vector<8x64xf32> to vector<2x64xf32>
    %cst_20 = arith.constant dense<0.000000e+00> : vector<64xf32>
    %24 = vector.multi_reduction <add>, %23, %cst_20 [0] : vector<2x64xf32> to vector<64xf32>
    %25 = vector.shape_cast %24 : vector<64xf32> to vector<1x64xf32>
    %cst_21 = arith.constant 5.000000e-01 : f32
    %26 = vector.broadcast %cst_21 : f32 to vector<1x64xf32>
    %27 = arith.mulf %25, %26 : vector<1x64xf32>
    %28 = vector.broadcast %27 : vector<1x64xf32> to vector<2x64xf32>
    %29 = arith.subf %23, %28 : vector<2x64xf32>
    %30 = arith.mulf %29, %29 : vector<2x64xf32>
    %cst_22 = arith.constant dense<0.000000e+00> : vector<64xf32>
    %31 = vector.multi_reduction <add>, %30, %cst_22 [0] : vector<2x64xf32> to vector<64xf32>
    %32 = vector.shape_cast %31 : vector<64xf32> to vector<1x64xf32>
    %cst_23 = arith.constant 5.000000e-01 : f32
    %33 = vector.broadcast %cst_23 : f32 to vector<1x64xf32>
    %34 = arith.mulf %32, %33 : vector<1x64xf32>
    %35 = vector.broadcast %27 : vector<1x64xf32> to vector<8x64xf32>
    %36 = arith.subf %22, %35 : vector<8x64xf32>
    %cst_24 = arith.constant 9.99999974E-6 : f32
    %37 = vector.broadcast %cst_24 : f32 to vector<1x64xf32>
    %38 = arith.addf %34, %37 : vector<1x64xf32>
    %39 = math.rsqrt %38 : vector<1x64xf32>
    %40 = vector.broadcast %39 : vector<1x64xf32> to vector<8x64xf32>
    %41 = arith.mulf %36, %40 : vector<8x64xf32>
    %c0_25 = arith.constant 0 : index
    %c0_26 = arith.constant 0 : index
    %42 = vector.load %arg7[%c0_25, %c0_26] : memref<1x64xf32, #tpu.memory_space<vmem>>, vector<1x64xf32>
    %43 = vector.broadcast %42 : vector<1x64xf32> to vector<8x64xf32>
    %44 = arith.mulf %41, %43 : vector<8x64xf32>
    %c0_27 = arith.constant 0 : index
    %c0_28 = arith.constant 0 : index
    %45 = vector.load %arg8[%c0_27, %c0_28] : memref<1x64xf32, #tpu.memory_space<vmem>>, vector<1x64xf32>
    %46 = vector.broadcast %45 : vector<1x64xf32> to vector<8x64xf32>
    %47 = arith.addf %44, %46 : vector<8x64xf32>
    %cst_29 = arith.constant 0.000000e+00 : f32
    %48 = vector.broadcast %cst_29 : f32 to vector<8x64xf32>
    %49 = arith.maximumf %47, %48 : vector<8x64xf32>
    %50 = arith.truncf %49 : vector<8x64xf32> to vector<8x64xbf16>
    %c0_30 = arith.constant 0 : index
    %c0_31 = arith.constant 0 : index
    %51 = vector.load %arg9[%c0_30, %c0_31] : memref<64x16xf32, #tpu.memory_space<vmem>>, vector<64x16xf32>
    %52 = arith.truncf %51 : vector<64x16xf32> to vector<64x16xbf16>
    %cst_32 = arith.constant dense<0.000000e+00> : vector<8x16xf32>
    %53 = tpu.matmul %50, %52, %cst_32 {dimension_numbers = #tpu.dot_dimension_numbers<[1], [0], [0], [1], [0, 0, 1, 1], [], []>} : vector<8x64xbf16>, vector<64x16xbf16>, vector<8x16xf32> -> vector<8x16xf32>
    %c0_33 = arith.constant 0 : index
    %c0_34 = arith.constant 0 : index
    %54 = vector.load %arg10[%c0_33, %c0_34] : memref<1x16xf32, #tpu.memory_space<vmem>>, vector<1x16xf32>
    %55 = vector.broadcast %54 : vector<1x16xf32> to vector<8x16xf32>
    %56 = arith.addf %53, %55 : vector<8x16xf32>
    %c0_35 = arith.constant 0 : index
    %c0_36 = arith.constant 0 : index
    %57 = vector.load %arg12[%c0_35, %c0_36] : memref<8x16xf32, #tpu.memory_space<vmem>>, vector<8x16xf32>
    tpu.vector_store %arg12[%c0_35, %c0_36], %56 {strides = array<i32>} : memref<8x16xf32, #tpu.memory_space<vmem>>, vector<8x16xf32>,
    return
  }
}

</mosaic_0001>

<llo_original>
// kernel: tile.8
$region0: #{tile.8}
  #allocation0 [shape = 's32[1]{0}', space=sflag, size = 0x4, scoped, tag = 'scoped memory for tile.8']
  %s0 = inlined_call_operand.vmem [shape: f32[32], index: 0, kind: input, shape index: {}]
  %s1 = inlined_call_operand.vmem [shape: f32[16,32], index: 1, kind: output, shape index: {}]
  // Predicated region
  $region2: #{tile.8} parent=0 // pred_check
    _
  $region3: #{tile.8} parent=0 // pred_check_branch
    %3 = sbr.rel (0) target = $region5
  $region4: #{tile.8} parent=0 // pred_region
    _
  $region5: #{tile.8} parent=0 // pred_fallthru
    _
  %v4 = vld [vmem:[%s0] ss:$0 sm:$0xff]
  %5 = vst [vmem:[%s1] sm:$0xff] %v4
  %s6 = scalar_lea.vmem %s1, 8
  %7 = vst [vmem:[%s6] sm:$0xff] %v4

// kernel: tile.9
$region0: #{tile.9}
  %s0 = inlined_call_operand.vmem [shape: f32[16,32], index: 0, kind: input, shape index: {}]
  %s1 = inlined_call_operand.vmem [shape: f32[1,512], index: 1, kind: output, shape index: {}]
  $region1: #{tile.9} parent=0
    #allocation0 [shape = 'u8[16384]{0}', space=vmem, size = 0x4000, scoped, tag = 'scoped mem for output reshape']
    %v2 = vld [vmem:[%s0] ss:$4 sm:$0xf]
    %vm3 = vcmask 261120
    %4 = vst.msk [vmem:[#allocation0] ss:$8 sm:$0xf] %vm3, %v2
    %s5 = scalar_lea.vmem %s0, 3
    %v6 = vld [vmem:[%s5] ss:$4 sm:$0xf]
    %7 = vrot.lane.b32.xlu0 %v6, 96
    %v8 = vpop.permute.xlu0 %7
    %vm9 = vcmask 1048320
    %10 = vst.msk [vmem:[#allocation0] ss:$8 sm:$0xf] %vm9, %v8
    %s11 = scalar_lea.vmem %s0, 2
    %v12 = vld [vmem:[%s11] ss:$4 sm:$0xf]
    %13 = vrot.lane.b32.xlu0 %v12, 64
    %v14 = vpop.permute.xlu0 %13
    %vm15 = vcmask 785920
    %16 = vst.msk [vmem:[#allocation0] ss:$8 sm:$0xf] %vm15, %v14
    %s17 = scalar_lea.vmem %s0, 1
    %v18 = vld [vmem:[%s17] ss:$4 sm:$0xf]
    %19 = vrot.lane.b32.xlu0 %v18, 32
    %v20 = vpop.permute.xlu0 %19
    %vm21 = vcmask 523520
    %22 = vst.msk [vmem:[#allocation0] ss:$8 sm:$0xf] %vm21, %v20
    %s24 = sshllo.u32 0, 1
    %v26 = vld [vmem:[#allocation0] sm:%s24]
    %s27 = sshllo.u32 0, 1
    %28 = vst [vmem:[%s1] sm:%s27] %v26
    %s29 = scalar_lea.vmem [#allocation0], 8
    %v30 = vld [vmem:[%s29] sm:%s24]
    %s31 = sshllo.u32 0, 1
    %s32 = scalar_lea.vmem %s1, 1
    %33 = vst [vmem:[%s32] sm:%s31] %v30
    %s34 = scalar_lea.vmem [#allocation0], 16
    %v35 = vld [vmem:[%s34] sm:%s24]
    %s36 = sshllo.u32 0, 1
    %s37 = smul.addr 1, 2
    %s38 = scalar_lea.vmem %s1, %s37
    %39 = vst [vmem:[%s38] sm:%s36] %v35
    %s40 = scalar_lea.vmem [#allocation0], 24
    %v41 = vld [vmem:[%s40] sm:%s24]
    %s42 = sshllo.u32 0, 1
    %s43 = smul.addr 1, 3
    %s44 = scalar_lea.vmem %s1, %s43
    %45 = vst [vmem:[%s44] sm:%s42] %v41

// kernel: net_wrapper_forward.1
$region0: #{net_wrapper_forward.1}
  #allocation0 [shape = 'u32[]', space=smem, size = 0x4, offset = 0x4, fixed_abs, tag = 'smem constant byte address 0x4 - core index']
  #allocation1 [shape = 'u32[144,128]{1,0:T(1,128)}', space=vmem, size = 0x12000, scoped, tag = 'internal scratch']
  %s0 = inlined_call_operand.vmem [shape: bf16[32,256], index: 0, kind: input, shape index: {}]
  %s1 = inlined_call_operand.vmem [shape: bf16[256,512], index: 1, kind: input, shape index: {}]
  %s2 = inlined_call_operand.vmem [shape: f32[1,512], index: 2, kind: input, shape index: {}]
  %s3 = inlined_call_operand.vmem [shape: bf16[512,128], index: 3, kind: input, shape index: {}]
  %s4 = inlined_call_operand.vmem [shape: bf16[8,32], index: 4, kind: input, shape index: {}]
  %s5 = inlined_call_operand.vmem [shape: f32[32,64], index: 5, kind: input, shape index: {}]
  %s6 = inlined_call_operand.vmem [shape: f32[1,64], index: 6, kind: input, shape index: {}]
  %s7 = inlined_call_operand.vmem [shape: f32[1,64], index: 7, kind: input, shape index: {}]
  %s8 = inlined_call_operand.vmem [shape: f32[1,64], index: 8, kind: input, shape index: {}]
  %s9 = inlined_call_operand.vmem [shape: f32[64,16], index: 9, kind: input, shape index: {}]
  %s10 = inlined_call_operand.vmem [shape: f32[1,16], index: 10, kind: input, shape index: {}]
  %s11 = inlined_call_operand.vmem [shape: f32[8,128], index: 11, kind: output, shape index: {0}]
  %s12 = inlined_call_operand.vmem [shape: f32[8,16], index: 12, kind: output, shape index: {1}]
  %13 = xla_tuple %s11, %s12
  %s14 = sld [smem:[#allocation0]]
  $region62: #{net_wrapper_forward.1} parent=0
    _
  %s16 = ssub.s32 1, %s14
  %s17 = scalar_select 0, %s16, %s14
  // Predicated region
  $region2: #{net_wrapper_forward.1} parent=0 // pred_check
    _
  $region3: #{net_wrapper_forward.1} parent=0 // pred_check_branch
    %19 = sbr.rel (0) target = $region5
  $region4: #{net_wrapper_forward.1} parent=0 // pred_region
    _
  $region5: #{net_wrapper_forward.1} parent=0 // pred_fallthru
    _
  // Predicated region
  $region6: #{net_wrapper_forward.1} parent=0 // pred_check
    _
  $region7: #{net_wrapper_forward.1} parent=0 // pred_check_branch
    %21 = sbr.rel (0) target = $region9
  $region8: #{net_wrapper_forward.1} parent=0 // pred_region
    _
  $region9: #{net_wrapper_forward.1} parent=0 // pred_fallthru
    _
  // Predicated region
  $region10: #{net_wrapper_forward.1} parent=0 // pred_check
    _
  $region11: #{net_wrapper_forward.1} parent=0 // pred_check_branch
    %23 = sbr.rel (0) target = $region13
  $region12: #{net_wrapper_forward.1} parent=0 // pred_region
    _
  $region13: #{net_wrapper_forward.1} parent=0 // pred_fallthru
    _
  // Predicated region
  $region14: #{net_wrapper_forward.1} parent=0 // pred_check
    _
  $region15: #{net_wrapper_forward.1} parent=0 // pred_check_branch
    %25 = sbr.rel (0) target = $region17
  $region16: #{net_wrapper_forward.1} parent=0 // pred_region
    _
  $region17: #{net_wrapper_forward.1} parent=0 // pred_fallthru
    _
  // Predicated region
  $region18: #{net_wrapper_forward.1} parent=0 // pred_check
    _
  $region19: #{net_wrapper_forward.1} parent=0 // pred_check_branch
    %27 = sbr.rel (0) target = $region21
  $region20: #{net_wrapper_forward.1} parent=0 // pred_region
    _
  $region21: #{net_wrapper_forward.1} parent=0 // pred_fallthru
    _
  // Predicated region
  $region22: #{net_wrapper_forward.1} parent=0 // pred_check
    _
  $region23: #{net_wrapper_forward.1} parent=0 // pred_check_branch
    %29 = sbr.rel (0) target = $region25
  $region24: #{net_wrapper_forward.1} parent=0 // pred_region
    _
  $region25: #{net_wrapper_forward.1} parent=0 // pred_fallthru
    _
  // Predicated region
  $region26: #{net_wrapper_forward.1} parent=0 // pred_check
    _
  $region27: #{net_wrapper_forward.1} parent=0 // pred_check_branch
    %31 = sbr.rel (0) target = $region29
  $region28: #{net_wrapper_forward.1} parent=0 // pred_region
    _
  $region29: #{net_wrapper_forward.1} parent=0 // pred_fallthru
    _
  // Predicated region
  $region30: #{net_wrapper_forward.1} parent=0 // pred_check
    _
  $region31: #{net_wrapper_forward.1} parent=0 // pred_check_branch
    %33 = sbr.rel (0) target = $region33
  $region32: #{net_wrapper_forward.1} parent=0 // pred_region
    _
  $region33: #{net_wrapper_forward.1} parent=0 // pred_fallthru
    _
  // Predicated region
  $region34: #{net_wrapper_forward.1} parent=0 // pred_check
    _
  $region35: #{net_wrapper_forward.1} parent=0 // pred_check_branch
    %35 = sbr.rel (0) target = $region37
  $region36: #{net_wrapper_forward.1} parent=0 // pred_region
    _
  $region37: #{net_wrapper_forward.1} parent=0 // pred_fallthru
    _
  // Predicated region
  $region38: #{net_wrapper_forward.1} parent=0 // pred_check
    _
  $region39: #{net_wrapper_forward.1} parent=0 // pred_check_branch
    %37 = sbr.rel (0) target = $region41
  $region40: #{net_wrapper_forward.1} parent=0 // pred_region
    _
  $region41: #{net_wrapper_forward.1} parent=0 // pred_fallthru
    _
  // Predicated region
  $region42: #{net_wrapper_forward.1} parent=0 // pred_check
    _
  $region43: #{net_wrapper_forward.1} parent=0 // pred_check_branch
    %39 = sbr.rel (0) target = $region45
  $region44: #{net_wrapper_forward.1} parent=0 // pred_region
    _
  $region45: #{net_wrapper_forward.1} parent=0 // pred_fallthru
    _
  %v41 = vld [vmem:[%s0] sm:$0xff]
  %v42 = vld [vmem:[%s0 + $0x8] sm:$0xff]
  %v43 = vld [vmem:[%s0 + $0x10] sm:$0xff]
  %v44 = vld [vmem:[%s0 + $0x18] sm:$0xff]
  %v45 = vld [vmem:[%s1] sm:$0xff]
  %v46 = vld [vmem:[%s1 + $0x8] sm:$0xff]
  %v47 = vld [vmem:[%s1 + $0x10] sm:$0xff]
  %v48 = vld [vmem:[%s1 + $0x18] sm:$0xff]
  %v49 = vld [vmem:[%s1 + $0x20] sm:$0xff]
  %v50 = vld [vmem:[%s1 + $0x28] sm:$0xff]
  %v51 = vld [vmem:[%s1 + $0x30] sm:$0xff]
  %v52 = vld [vmem:[%s1 + $0x38] sm:$0xff]
  %v53 = vld [vmem:[%s1 + $0x40] sm:$0xff]
  %v54 = vld [vmem:[%s1 + $0x48] sm:$0xff]
  %v55 = vld [vmem:[%s1 + $0x50] sm:$0xff]
  %v56 = vld [vmem:[%s1 + $0x58] sm:$0xff]
  %v57 = vld [vmem:[%s1 + $0x60] sm:$0xff]
  %v58 = vld [vmem:[%s1 + $0x68] sm:$0xff]
  %v59 = vld [vmem:[%s1 + $0x70] sm:$0xff]
  %v60 = vld [vmem:[%s1 + $0x78] sm:$0xff]
  %v61 = vld [vmem:[%s1 + $0x80] sm:$0xff]
  %v62 = vld [vmem:[%s1 + $0x88] sm:$0xff]
  %v63 = vld [vmem:[%s1 + $0x90] sm:$0xff]
  %v64 = vld [vmem:[%s1 + $0x98] sm:$0xff]
  %v65 = vld [vmem:[%s1 + $0xa0] sm:$0xff]
  %v66 = vld [vmem:[%s1 + $0xa8] sm:$0xff]
  %v67 = vld [vmem:[%s1 + $0xb0] sm:$0xff]
  %v68 = vld [vmem:[%s1 + $0xb8] sm:$0xff]
  %v69 = vld [vmem:[%s1 + $0xc0] sm:$0xff]
  %v70 = vld [vmem:[%s1 + $0xc8] sm:$0xff]
  %v71 = vld [vmem:[%s1 + $0xd0] sm:$0xff]
  %v72 = vld [vmem:[%s1 + $0xd8] sm:$0xff]
  %v73 = vld [vmem:[%s1 + $0xe0] sm:$0xff]
  %v74 = vld [vmem:[%s1 + $0xe8] sm:$0xff]
  %v75 = vld [vmem:[%s1 + $0xf0] sm:$0xff]
  %v76 = vld [vmem:[%s1 + $0xf8] sm:$0xff]
  %v77 = vld [vmem:[%s1 + $0x100] sm:$0xff]
  %v78 = vld [vmem:[%s1 + $0x108] sm:$0xff]
  %v79 = vld [vmem:[%s1 + $0x110] sm:$0xff]
  %v80 = vld [vmem:[%s1 + $0x118] sm:$0xff]
  %v81 = vld [vmem:[%s1 + $0x120] sm:$0xff]
  %v82 = vld [vmem:[%s1 + $0x128] sm:$0xff]
  %v83 = vld [vmem:[%s1 + $0x130] sm:$0xff]
  %v84 = vld [vmem:[%s1 + $0x138] sm:$0xff]
  %v85 = vld [vmem:[%s1 + $0x140] sm:$0xff]
  %v86 = vld [vmem:[%s1 + $0x148] sm:$0xff]
  %v87 = vld [vmem:[%s1 + $0x150] sm:$0xff]
  %v88 = vld [vmem:[%s1 + $0x158] sm:$0xff]
  %v89 = vld [vmem:[%s1 + $0x160] sm:$0xff]
  %v90 = vld [vmem:[%s1 + $0x168] sm:$0xff]
  %v91 = vld [vmem:[%s1 + $0x170] sm:$0xff]
  %v92 = vld [vmem:[%s1 + $0x178] sm:$0xff]
  %v93 = vld [vmem:[%s1 + $0x180] sm:$0xff]
  %v94 = vld [vmem:[%s1 + $0x188] sm:$0xff]
  %v95 = vld [vmem:[%s1 + $0x190] sm:$0xff]
  %v96 = vld [vmem:[%s1 + $0x198] sm:$0xff]
  %v97 = vld [vmem:[%s1 + $0x1a0] sm:$0xff]
  %v98 = vld [vmem:[%s1 + $0x1a8] sm:$0xff]
  %v99 = vld [vmem:[%s1 + $0x1b0] sm:$0xff]
  %v100 = vld [vmem:[%s1 + $0x1b8] sm:$0xff]
  %v101 = vld [vmem:[%s1 + $0x1c0] sm:$0xff]
  %v102 = vld [vmem:[%s1 + $0x1c8] sm:$0xff]
  %v103 = vld [vmem:[%s1 + $0x1d0] sm:$0xff]
  %v104 = vld [vmem:[%s1 + $0x1d8] sm:$0xff]
  %v105 = vld [vmem:[%s1 + $0x1e0] sm:$0xff]
  %v106 = vld [vmem:[%s1 + $0x1e8] sm:$0xff]
  %v107 = vld [vmem:[%s1 + $0x1f0] sm:$0xff]
  %v108 = vld [vmem:[%s1 + $0x1f8] sm:$0xff]
  %v109 = vld [vmem:[%s2] sm:$0xf]
  %v111 = vlaneseq
  %v112 = vshrl.u32 %v111, 7
  %v113 = vsub.s32 0, %v112
  %v114 = vrot.slane %v109, %v113
  %v115 = vlaneseq
  %v116 = vshrl.u32 %v115, 7
  %v117 = vsub.s32 1, %v116
  %v118 = vrot.slane %v109, %v117
  %v119 = vlaneseq
  %v120 = vshrl.u32 %v119, 7
  %v121 = vsub.s32 2, %v120
  %v122 = vrot.slane %v109, %v121
  %v123 = vlaneseq
  %v124 = vshrl.u32 %v123, 7
  %v125 = vsub.s32 3, %v124
  %v126 = vrot.slane %v109, %v125
  %v135 = vunpack.c.l.b16 %v41
  %v136 = vunpack.c.h.b16 %v41
  %v137 = vunpack.c.l.b16 %v42
  %v138 = vunpack.c.h.b16 %v42
  %v139 = vunpack.c.l.b16 %v43
  %v140 = vunpack.c.h.b16 %v43
  %v141 = vunpack.c.l.b16 %v44
  %v142 = vunpack.c.h.b16 %v44
  %v143 = vpack.c.b16 %v137, %v135
  %v144 = vpack.c.b16 %v138, %v136
  %v145 = vpack.c.b16 %v141, %v139
  %v146 = vpack.c.b16 %v142, %v140
  %v215 = vunpack.c.l.b16 %v45
  %v216 = vunpack.c.h.b16 %v45
  %v217 = vunpack.c.l.b16 %v46
  %v218 = vunpack.c.h.b16 %v46
  %v219 = vunpack.c.l.b16 %v47
  %v220 = vunpack.c.h.b16 %v47
  %v221 = vunpack.c.l.b16 %v48
  %v222 = vunpack.c.h.b16 %v48
  %v223 = vunpack.c.l.b16 %v49
  %v224 = vunpack.c.h.b16 %v49
  %v225 = vunpack.c.l.b16 %v50
  %v226 = vunpack.c.h.b16 %v50
  %v227 = vunpack.c.l.b16 %v51
  %v228 = vunpack.c.h.b16 %v51
  %v229 = vunpack.c.l.b16 %v52
  %v230 = vunpack.c.h.b16 %v52
  %v231 = vunpack.c.l.b16 %v53
  %v232 = vunpack.c.h.b16 %v53
  %v233 = vunpack.c.l.b16 %v54
  %v234 = vunpack.c.h.b16 %v54
  %v235 = vunpack.c.l.b16 %v55
  %v236 = vunpack.c.h.b16 %v55
  %v237 = vunpack.c.l.b16 %v56
  %v238 = vunpack.c.h.b16 %v56
  %v239 = vunpack.c.l.b16 %v57
  %v240 = vunpack.c.h.b16 %v57
  %v241 = vunpack.c.l.b16 %v58
  %v242 = vunpack.c.h.b16 %v58
  %v243 = vunpack.c.l.b16 %v59
  %v244 = vunpack.c.h.b16 %v59
  %v245 = vunpack.c.l.b16 %v60
  %v246 = vunpack.c.h.b16 %v60
  %v247 = vunpack.c.l.b16 %v61
  %v248 = vunpack.c.h.b16 %v61
  %v249 = vunpack.c.l.b16 %v62
  %v250 = vunpack.c.h.b16 %v62
  %v251 = vunpack.c.l.b16 %v63
  %v252 = vunpack.c.h.b16 %v63
  %v253 = vunpack.c.l.b16 %v64
  %v254 = vunpack.c.h.b16 %v64
  %v255 = vunpack.c.l.b16 %v65
  %v256 = vunpack.c.h.b16 %v65
  %v257 = vunpack.c.l.b16 %v66
  %v258 = vunpack.c.h.b16 %v66
  %v259 = vunpack.c.l.b16 %v67
  %v260 = vunpack.c.h.b16 %v67
  %v261 = vunpack.c.l.b16 %v68
  %v262 = vunpack.c.h.b16 %v68
  %v263 = vunpack.c.l.b16 %v69
  %v264 = vunpack.c.h.b16 %v69
  %v265 = vunpack.c.l.b16 %v70
  %v266 = vunpack.c.h.b16 %v70
  %v267 = vunpack.c.l.b16 %v71
  %v268 = vunpack.c.h.b16 %v71
  %v269 = vunpack.c.l.b16 %v72
  %v270 = vunpack.c.h.b16 %v72
  %v271 = vunpack.c.l.b16 %v73
  %v272 = vunpack.c.h.b16 %v73
  %v273 = vunpack.c.l.b16 %v74
  %v274 = vunpack.c.h.b16 %v74
  %v275 = vunpack.c.l.b16 %v75
  %v276 = vunpack.c.h.b16 %v75
  %v277 = vunpack.c.l.b16 %v76
  %v278 = vunpack.c.h.b16 %v76
  %v279 = vunpack.c.l.b16 %v77
  %v280 = vunpack.c.h.b16 %v77
  %v281 = vunpack.c.l.b16 %v78
  %v282 = vunpack.c.h.b16 %v78
  %v283 = vunpack.c.l.b16 %v79
  %v284 = vunpack.c.h.b16 %v79
  %v285 = vunpack.c.l.b16 %v80
  %v286 = vunpack.c.h.b16 %v80
  %v287 = vunpack.c.l.b16 %v81
  %v288 = vunpack.c.h.b16 %v81
  %v289 = vunpack.c.l.b16 %v82
  %v290 = vunpack.c.h.b16 %v82
  %v291 = vunpack.c.l.b16 %v83
  %v292 = vunpack.c.h.b16 %v83
  %v293 = vunpack.c.l.b16 %v84
  %v294 = vunpack.c.h.b16 %v84
  %v295 = vunpack.c.l.b16 %v85
  %v296 = vunpack.c.h.b16 %v85
  %v297 = vunpack.c.l.b16 %v86
  %v298 = vunpack.c.h.b16 %v86
  %v299 = vunpack.c.l.b16 %v87
  %v300 = vunpack.c.h.b16 %v87
  %v301 = vunpack.c.l.b16 %v88
  %v302 = vunpack.c.h.b16 %v88
  %v303 = vunpack.c.l.b16 %v89
  %v304 = vunpack.c.h.b16 %v89
  %v305 = vunpack.c.l.b16 %v90
  %v306 = vunpack.c.h.b16 %v90
  %v307 = vunpack.c.l.b16 %v91
  %v308 = vunpack.c.h.b16 %v91
  %v309 = vunpack.c.l.b16 %v92
  %v310 = vunpack.c.h.b16 %v92
  %v311 = vunpack.c.l.b16 %v93
  %v312 = vunpack.c.h.b16 %v93
  %v313 = vunpack.c.l.b16 %v94
  %v314 = vunpack.c.h.b16 %v94
  %v315 = vunpack.c.l.b16 %v95
  %v316 = vunpack.c.h.b16 %v95
  %v317 = vunpack.c.l.b16 %v96
  %v318 = vunpack.c.h.b16 %v96
  %v319 = vunpack.c.l.b16 %v97
  %v320 = vunpack.c.h.b16 %v97
  %v321 = vunpack.c.l.b16 %v98
  %v322 = vunpack.c.h.b16 %v98
  %v323 = vunpack.c.l.b16 %v99
  %v324 = vunpack.c.h.b16 %v99
  %v325 = vunpack.c.l.b16 %v100
  %v326 = vunpack.c.h.b16 %v100
  %v327 = vunpack.c.l.b16 %v101
  %v328 = vunpack.c.h.b16 %v101
  %v329 = vunpack.c.l.b16 %v102
  %v330 = vunpack.c.h.b16 %v102
  %v331 = vunpack.c.l.b16 %v103
  %v332 = vunpack.c.h.b16 %v103
  %v333 = vunpack.c.l.b16 %v104
  %v334 = vunpack.c.h.b16 %v104
  %v335 = vunpack.c.l.b16 %v105
  %v336 = vunpack.c.h.b16 %v105
  %v337 = vunpack.c.l.b16 %v106
  %v338 = vunpack.c.h.b16 %v106
  %v339 = vunpack.c.l.b16 %v107
  %v340 = vunpack.c.h.b16 %v107
  %v341 = vunpack.c.l.b16 %v108
  %v342 = vunpack.c.h.b16 %v108
  %v343 = vpack.c.b16 %v219, %v215
  %v344 = vpack.c.b16 %v220, %v216
  %v345 = vpack.c.b16 %v221, %v217
  %v346 = vpack.c.b16 %v222, %v218
  %v347 = vpack.c.b16 %v227, %v223
  %v348 = vpack.c.b16 %v228, %v224
  %v349 = vpack.c.b16 %v229, %v225
  %v350 = vpack.c.b16 %v230, %v226
  %v351 = vpack.c.b16 %v235, %v231
  %v352 = vpack.c.b16 %v236, %v232
  %v353 = vpack.c.b16 %v237, %v233
  %v354 = vpack.c.b16 %v238, %v234
  %v355 = vpack.c.b16 %v243, %v239
  %v356 = vpack.c.b16 %v244, %v240
  %v357 = vpack.c.b16 %v245, %v241
  %v358 = vpack.c.b16 %v246, %v242
  %v359 = vpack.c.b16 %v251, %v247
  %v360 = vpack.c.b16 %v252, %v248
  %v361 = vpack.c.b16 %v253, %v249
  %v362 = vpack.c.b16 %v254, %v250
  %v363 = vpack.c.b16 %v259, %v255
  %v364 = vpack.c.b16 %v260, %v256
  %v365 = vpack.c.b16 %v261, %v257
  %v366 = vpack.c.b16 %v262, %v258
  %v367 = vpack.c.b16 %v267, %v263
  %v368 = vpack.c.b16 %v268, %v264
  %v369 = vpack.c.b16 %v269, %v265
  %v370 = vpack.c.b16 %v270, %v266
  %v371 = vpack.c.b16 %v275, %v271
  %v372 = vpack.c.b16 %v276, %v272
  %v373 = vpack.c.b16 %v277, %v273
  %v374 = vpack.c.b16 %v278, %v274
  %v375 = vpack.c.b16 %v283, %v279
  %v376 = vpack.c.b16 %v284, %v280
  %v377 = vpack.c.b16 %v285, %v281
  %v378 = vpack.c.b16 %v286, %v282
  %v379 = vpack.c.b16 %v291, %v287
  %v380 = vpack.c.b16 %v292, %v288
  %v381 = vpack.c.b16 %v293, %v289
  %v382 = vpack.c.b16 %v294, %v290
  %v383 = vpack.c.b16 %v299, %v295
  %v384 = vpack.c.b16 %v300, %v296
  %v385 = vpack.c.b16 %v301, %v297
  %v386 = vpack.c.b16 %v302, %v298
  %v387 = vpack.c.b16 %v307, %v303
  %v388 = vpack.c.b16 %v308, %v304
  %v389 = vpack.c.b16 %v309, %v305
  %v390 = vpack.c.b16 %v310, %v306
  %v391 = vpack.c.b16 %v315, %v311
  %v392 = vpack.c.b16 %v316, %v312
  %v393 = vpack.c.b16 %v317, %v313
  %v394 = vpack.c.b16 %v318, %v314
  %v395 = vpack.c.b16 %v323, %v319
  %v396 = vpack.c.b16 %v324, %v320
  %v397 = vpack.c.b16 %v325, %v321
  %v398 = vpack.c.b16 %v326, %v322
  %v399 = vpack.c.b16 %v331, %v327
  %v400 = vpack.c.b16 %v332, %v328
  %v401 = vpack.c.b16 %v333, %v329
  %v402 = vpack.c.b16 %v334, %v330
  %v403 = vpack.c.b16 %v339, %v335
  %v404 = vpack.c.b16 %v340, %v336
  %v405 = vpack.c.b16 %v341, %v337
  %v406 = vpack.c.b16 %v342, %v338
  %471 = vmatprep.subr.bf16.mxu0 %v344
  %472 = vmatpush1.bf16.msra.mxu0 %v343
  %473 = vmatprep.subr.bf16.mxu0 %v348
  %474 = vmatpush1.bf16.msra.mxu0 %v347
  %475 = vmatprep.subr.bf16.mxu0 %v352
  %476 = vmatpush1.bf16.msra.mxu0 %v351
  %477 = vmatprep.subr.bf16.mxu0 %v356
  %478 = vmatpush1.bf16.msra.mxu0 %v355
  %479 = vmatprep.subr.bf16.mxu0 %v360
  %480 = vmatpush1.bf16.msra.mxu0 %v359
  %481 = vmatprep.subr.bf16.mxu0 %v364
  %482 = vmatpush1.bf16.msra.mxu0 %v363
  %483 = vmatprep.subr.bf16.mxu0 %v368
  %484 = vmatpush1.bf16.msra.mxu0 %v367
  %485 = vmatprep.subr.bf16.mxu0 %v372
  %486 = vmatpush1.bf16.msra.mxu0 %v371
  %487 = vmatprep.subr.bf16.mxu0 %v376
  %488 = vmatpush1.bf16.msra.mxu0 %v375
  %489 = vmatprep.subr.bf16.mxu0 %v380
  %490 = vmatpush1.bf16.msra.mxu0 %v379
  %491 = vmatprep.subr.bf16.mxu0 %v384
  %492 = vmatpush1.bf16.msra.mxu0 %v383
  %493 = vmatprep.subr.bf16.mxu0 %v388
  %494 = vmatpush1.bf16.msra.mxu0 %v387
  %495 = vmatprep.subr.bf16.mxu0 %v392
  %496 = vmatpush1.bf16.msra.mxu0 %v391
  %497 = vmatprep.subr.bf16.mxu0 %v396
  %498 = vmatpush1.bf16.msra.mxu0 %v395
  %499 = vmatprep.subr.bf16.mxu0 %v400
  %500 = vmatpush1.bf16.msra.mxu0 %v399
  %501 = vmatprep.subr.bf16.mxu0 %v404
  %502 = vmatpush1.bf16.msra.mxu0 %v403
  %503 = vmatprep.mubr.bf16.mxu0 %v144
  %504 = vmatmul.mubr.bf16.gmra.mrb[0].mxu0 %v143
  %v505 = vpop.f32.mrb[0].mxu0
  %v506 = vadd.f32 %v114, %v505
  %v507 = vpop.f32.mrb[0].mxu0
  %v508 = vadd.f32 %v118, %v507
  %v509 = vpop.f32.mrb[0].mxu0
  %v510 = vadd.f32 %v114, %v509
  %v511 = vpop.f32.mrb[0].mxu0
  %v512 = vadd.f32 %v118, %v511
  %513 = vmatprep.mubr.bf16.mxu0 %v146
  %514 = vmatmul.mubr.bf16.gmra.mrb[0].mxu0 %v145
  %v515 = vpop.f32.mrb[0].mxu0
  %v516 = vadd.f32 %v114, %v515
  %v517 = vpop.f32.mrb[0].mxu0
  %v518 = vadd.f32 %v118, %v517
  %v519 = vpop.f32.mrb[0].mxu0
  %v520 = vadd.f32 %v114, %v519
  %v521 = vpop.f32.mrb[0].mxu0
  %v522 = vadd.f32 %v118, %v521
  %523 = vdwg.mxu0
  %524 = vmatprep.subr.bf16.mxu0 %v346
  %525 = vmatpush1.bf16.msra.mxu0 %v345
  %526 = vmatprep.subr.bf16.mxu0 %v350
  %527 = vmatpush1.bf16.msra.mxu0 %v349
  %528 = vmatprep.subr.bf16.mxu0 %v354
  %529 = vmatpush1.bf16.msra.mxu0 %v353
  %530 = vmatprep.subr.bf16.mxu0 %v358
  %531 = vmatpush1.bf16.msra.mxu0 %v357
  %532 = vmatprep.subr.bf16.mxu0 %v362
  %533 = vmatpush1.bf16.msra.mxu0 %v361
  %534 = vmatprep.subr.bf16.mxu0 %v366
  %535 = vmatpush1.bf16.msra.mxu0 %v365
  %536 = vmatprep.subr.bf16.mxu0 %v370
  %537 = vmatpush1.bf16.msra.mxu0 %v369
  %538 = vmatprep.subr.bf16.mxu0 %v374
  %539 = vmatpush1.bf16.msra.mxu0 %v373
  %540 = vmatprep.subr.bf16.mxu0 %v378
  %541 = vmatpush1.bf16.msra.mxu0 %v377
  %542 = vmatprep.subr.bf16.mxu0 %v382
  %543 = vmatpush1.bf16.msra.mxu0 %v381
  %544 = vmatprep.subr.bf16.mxu0 %v386
  %545 = vmatpush1.bf16.msra.mxu0 %v385
  %546 = vmatprep.subr.bf16.mxu0 %v390
  %547 = vmatpush1.bf16.msra.mxu0 %v389
  %548 = vmatprep.subr.bf16.mxu0 %v394
  %549 = vmatpush1.bf16.msra.mxu0 %v393
  %550 = vmatprep.subr.bf16.mxu0 %v398
  %551 = vmatpush1.bf16.msra.mxu0 %v397
  %552 = vmatprep.subr.bf16.mxu0 %v402
  %553 = vmatpush1.bf16.msra.mxu0 %v401
  %554 = vmatprep.subr.bf16.mxu0 %v406
  %555 = vmatpush1.bf16.msra.mxu0 %v405
  %556 = vmatprep.mubr.bf16.mxu0 %v144
  %557 = vmatmul.mubr.bf16.gmra.mrb[0].mxu0 %v143
  %v558 = vpop.f32.mrb[0].mxu0
  %v559 = vadd.f32 %v122, %v558
  %v560 = vpop.f32.mrb[0].mxu0
  %v561 = vadd.f32 %v126, %v560
  %v562 = vpop.f32.mrb[0].mxu0
  %v563 = vadd.f32 %v122, %v562
  %v564 = vpop.f32.mrb[0].mxu0
  %v565 = vadd.f32 %v126, %v564
  %566 = vmatprep.mubr.bf16.mxu0 %v146
  %567 = vmatmul.mubr.bf16.gmra.mrb[0].mxu0 %v145
  %v568 = vpop.f32.mrb[0].mxu0
  %v569 = vadd.f32 %v122, %v568
  %v570 = vpop.f32.mrb[0].mxu0
  %v571 = vadd.f32 %v126, %v570
  %v572 = vpop.f32.mrb[0].mxu0
  %v573 = vadd.f32 %v122, %v572
  %v574 = vpop.f32.mrb[0].mxu0
  %v575 = vadd.f32 %v126, %v574
  %576 = vdwg.mxu0
  %v577 = vmax.f32 %v506, 0.0
  %v578 = vmax.f32 %v508, 0.0
  %v579 = vmax.f32 %v559, 0.0
  %v580 = vmax.f32 %v561, 0.0
  %v581 = vmax.f32 %v510, 0.0
  %v582 = vmax.f32 %v512, 0.0
  %v583 = vmax.f32 %v563, 0.0
  %v584 = vmax.f32 %v565, 0.0
  %v585 = vmax.f32 %v516, 0.0
  %v586 = vmax.f32 %v518, 0.0
  %v587 = vmax.f32 %v569, 0.0
  %v588 = vmax.f32 %v571, 0.0
  %v589 = vmax.f32 %v520, 0.0
  %v590 = vmax.f32 %v522, 0.0
  %v591 = vmax.f32 %v573, 0.0
  %v592 = vmax.f32 %v575, 0.0
  %v593 = vpack.c.bf16 %v581, %v577
  %v594 = vpack.c.bf16 %v582, %v578
  %v595 = vpack.c.bf16 %v583, %v579
  %v596 = vpack.c.bf16 %v584, %v580
  %v597 = vpack.c.bf16 %v589, %v585
  %v598 = vpack.c.bf16 %v590, %v586
  %v599 = vpack.c.bf16 %v591, %v587
  %v600 = vpack.c.bf16 %v592, %v588
  %v601 = vld [vmem:[%s3] sm:$0xf]
  %v602 = vld [vmem:[%s3 + $0x4] sm:$0xf]
  %v603 = vld [vmem:[%s3 + $0x8] sm:$0xf]
  %v604 = vld [vmem:[%s3 + $0xc] sm:$0xf]
  %v605 = vld [vmem:[%s3 + $0x10] sm:$0xf]
  %v606 = vld [vmem:[%s3 + $0x14] sm:$0xf]
  %v607 = vld [vmem:[%s3 + $0x18] sm:$0xf]
  %v608 = vld [vmem:[%s3 + $0x1c] sm:$0xf]
  %v609 = vld [vmem:[%s3 + $0x20] sm:$0xf]
  %v610 = vld [vmem:[%s3 + $0x24] sm:$0xf]
  %v611 = vld [vmem:[%s3 + $0x28] sm:$0xf]
  %v612 = vld [vmem:[%s3 + $0x2c] sm:$0xf]
  %v613 = vld [vmem:[%s3 + $0x30] sm:$0xf]
  %v614 = vld [vmem:[%s3 + $0x34] sm:$0xf]
  %v615 = vld [vmem:[%s3 + $0x38] sm:$0xf]
  %v616 = vld [vmem:[%s3 + $0x3c] sm:$0xf]
  %v617 = vld [vmem:[%s3 + $0x40] sm:$0xf]
  %v618 = vld [vmem:[%s3 + $0x44] sm:$0xf]
  %v619 = vld [vmem:[%s3 + $0x48] sm:$0xf]
  %v620 = vld [vmem:[%s3 + $0x4c] sm:$0xf]
  %v621 = vld [vmem:[%s3 + $0x50] sm:$0xf]
  %v622 = vld [vmem:[%s3 + $0x54] sm:$0xf]
  %v623 = vld [vmem:[%s3 + $0x58] sm:$0xf]
  %v624 = vld [vmem:[%s3 + $0x5c] sm:$0xf]
  %v625 = vld [vmem:[%s3 + $0x60] sm:$0xf]
  %v626 = vld [vmem:[%s3 + $0x64] sm:$0xf]
  %v627 = vld [vmem:[%s3 + $0x68] sm:$0xf]
  %v628 = vld [vmem:[%s3 + $0x6c] sm:$0xf]
  %v629 = vld [vmem:[%s3 + $0x70] sm:$0xf]
  %v630 = vld [vmem:[%s3 + $0x74] sm:$0xf]
  %v631 = vld [vmem:[%s3 + $0x78] sm:$0xf]
  %v632 = vld [vmem:[%s3 + $0x7c] sm:$0xf]
  %v633 = vld [vmem:[%s3 + $0x80] sm:$0xf]
  %v634 = vld [vmem:[%s3 + $0x84] sm:$0xf]
  %v635 = vld [vmem:[%s3 + $0x88] sm:$0xf]
  %v636 = vld [vmem:[%s3 + $0x8c] sm:$0xf]
  %v637 = vld [vmem:[%s3 + $0x90] sm:$0xf]
  %v638 = vld [vmem:[%s3 + $0x94] sm:$0xf]
  %v639 = vld [vmem:[%s3 + $0x98] sm:$0xf]
  %v640 = vld [vmem:[%s3 + $0x9c] sm:$0xf]
  %v641 = vld [vmem:[%s3 + $0xa0] sm:$0xf]
  %v642 = vld [vmem:[%s3 + $0xa4] sm:$0xf]
  %v643 = vld [vmem:[%s3 + $0xa8] sm:$0xf]
  %v644 = vld [vmem:[%s3 + $0xac] sm:$0xf]
  %v645 = vld [vmem:[%s3 + $0xb0] sm:$0xf]
  %v646 = vld [vmem:[%s3 + $0xb4] sm:$0xf]
  %v647 = vld [vmem:[%s3 + $0xb8] sm:$0xf]
  %v648 = vld [vmem:[%s3 + $0xbc] sm:$0xf]
  %v649 = vld [vmem:[%s3 + $0xc0] sm:$0xf]
  %v650 = vld [vmem:[%s3 + $0xc4] sm:$0xf]
  %v651 = vld [vmem:[%s3 + $0xc8] sm:$0xf]
  %v652 = vld [vmem:[%s3 + $0xcc] sm:$0xf]
  %v653 = vld [vmem:[%s3 + $0xd0] sm:$0xf]
  %v654 = vld [vmem:[%s3 + $0xd4] sm:$0xf]
  %v655 = vld [vmem:[%s3 + $0xd8] sm:$0xf]
  %v656 = vld [vmem:[%s3 + $0xdc] sm:$0xf]
  %v657 = vld [vmem:[%s3 + $0xe0] sm:$0xf]
  %v658 = vld [vmem:[%s3 + $0xe4] sm:$0xf]
  %v659 = vld [vmem:[%s3 + $0xe8] sm:$0xf]
  %v660 = vld [vmem:[%s3 + $0xec] sm:$0xf]
  %v661 = vld [vmem:[%s3 + $0xf0] sm:$0xf]
  %v662 = vld [vmem:[%s3 + $0xf4] sm:$0xf]
  %v663 = vld [vmem:[%s3 + $0xf8] sm:$0xf]
  %v664 = vld [vmem:[%s3 + $0xfc] sm:$0xf]
  %v729 = vunpack.c.l.b16 %v601
  %v730 = vunpack.c.l.b16 %v602
  %v731 = vunpack.c.l.b16 %v603
  %v732 = vunpack.c.l.b16 %v604
  %v733 = vunpack.c.l.b16 %v605
  %v734 = vunpack.c.l.b16 %v606
  %v735 = vunpack.c.l.b16 %v607
  %v736 = vunpack.c.l.b16 %v608
  %v737 = vunpack.c.l.b16 %v609
  %v738 = vunpack.c.l.b16 %v610
  %v739 = vunpack.c.l.b16 %v611
  %v740 = vunpack.c.l.b16 %v612
  %v741 = vunpack.c.l.b16 %v613
  %v742 = vunpack.c.l.b16 %v614
  %v743 = vunpack.c.l.b16 %v615
  %v744 = vunpack.c.l.b16 %v616
  %v745 = vunpack.c.l.b16 %v617
  %v746 = vunpack.c.l.b16 %v618
  %v747 = vunpack.c.l.b16 %v619
  %v748 = vunpack.c.l.b16 %v620
  %v749 = vunpack.c.l.b16 %v621
  %v750 = vunpack.c.l.b16 %v622
  %v751 = vunpack.c.l.b16 %v623
  %v752 = vunpack.c.l.b16 %v624
  %v753 = vunpack.c.l.b16 %v625
  %v754 = vunpack.c.l.b16 %v626
  %v755 = vunpack.c.l.b16 %v627
  %v756 = vunpack.c.l.b16 %v628
  %v757 = vunpack.c.l.b16 %v629
  %v758 = vunpack.c.l.b16 %v630
  %v759 = vunpack.c.l.b16 %v631
  %v760 = vunpack.c.l.b16 %v632
  %v761 = vunpack.c.l.b16 %v633
  %v762 = vunpack.c.l.b16 %v634
  %v763 = vunpack.c.l.b16 %v635
  %v764 = vunpack.c.l.b16 %v636
  %v765 = vunpack.c.l.b16 %v637
  %v766 = vunpack.c.l.b16 %v638
  %v767 = vunpack.c.l.b16 %v639
  %v768 = vunpack.c.l.b16 %v640
  %v769 = vunpack.c.l.b16 %v641
  %v770 = vunpack.c.l.b16 %v642
  %v771 = vunpack.c.l.b16 %v643
  %v772 = vunpack.c.l.b16 %v644
  %v773 = vunpack.c.l.b16 %v645
  %v774 = vunpack.c.l.b16 %v646
  %v775 = vunpack.c.l.b16 %v647
  %v776 = vunpack.c.l.b16 %v648
  %v777 = vunpack.c.l.b16 %v649
  %v778 = vunpack.c.l.b16 %v650
  %v779 = vunpack.c.l.b16 %v651
  %v780 = vunpack.c.l.b16 %v652
  %v781 = vunpack.c.l.b16 %v653
  %v782 = vunpack.c.l.b16 %v654
  %v783 = vunpack.c.l.b16 %v655
  %v784 = vunpack.c.l.b16 %v656
  %v785 = vunpack.c.l.b16 %v657
  %v786 = vunpack.c.l.b16 %v658
  %v787 = vunpack.c.l.b16 %v659
  %v788 = vunpack.c.l.b16 %v660
  %v789 = vunpack.c.l.b16 %v661
  %v790 = vunpack.c.l.b16 %v662
  %v791 = vunpack.c.l.b16 %v663
  %v792 = vunpack.c.l.b16 %v664
  %v793 = vpack.c.b16 %v730, %v729
  %v794 = vpack.c.b16 %v732, %v731
  %v795 = vpack.c.b16 %v734, %v733
  %v796 = vpack.c.b16 %v736, %v735
  %v797 = vpack.c.b16 %v738, %v737
  %v798 = vpack.c.b16 %v740, %v739
  %v799 = vpack.c.b16 %v742, %v741
  %v800 = vpack.c.b16 %v744, %v743
  %v801 = vpack.c.b16 %v746, %v745
  %v802 = vpack.c.b16 %v748, %v747
  %v803 = vpack.c.b16 %v750, %v749
  %v804 = vpack.c.b16 %v752, %v751
  %v805 = vpack.c.b16 %v754, %v753
  %v806 = vpack.c.b16 %v756, %v755
  %v807 = vpack.c.b16 %v758, %v757
  %v808 = vpack.c.b16 %v760, %v759
  %v809 = vpack.c.b16 %v762, %v761
  %v810 = vpack.c.b16 %v764, %v763
  %v811 = vpack.c.b16 %v766, %v765
  %v812 = vpack.c.b16 %v768, %v767
  %v813 = vpack.c.b16 %v770, %v769
  %v814 = vpack.c.b16 %v772, %v771
  %v815 = vpack.c.b16 %v774, %v773
  %v816 = vpack.c.b16 %v776, %v775
  %v817 = vpack.c.b16 %v778, %v777
  %v818 = vpack.c.b16 %v780, %v779
  %v819 = vpack.c.b16 %v782, %v781
  %v820 = vpack.c.b16 %v784, %v783
  %v821 = vpack.c.b16 %v786, %v785
  %v822 = vpack.c.b16 %v788, %v787
  %v823 = vpack.c.b16 %v790, %v789
  %v824 = vpack.c.b16 %v792, %v791
  %857 = vmatprep.subr.bf16.mxu0 0
  %858 = vmatpush1.bf16.msra.mxu0 %v793
  %859 = vmatprep.subr.bf16.mxu0 0
  %860 = vmatpush1.bf16.msra.mxu0 %v794
  %861 = vmatprep.subr.bf16.mxu0 0
  %862 = vmatpush1.bf16.msra.mxu0 %v795
  %863 = vmatprep.subr.bf16.mxu0 0
  %864 = vmatpush1.bf16.msra.mxu0 %v796
  %865 = vmatprep.subr.bf16.mxu0 0
  %866 = vmatpush1.bf16.msra.mxu0 %v797
  %867 = vmatprep.subr.bf16.mxu0 0
  %868 = vmatpush1.bf16.msra.mxu0 %v798
  %869 = vmatprep.subr.bf16.mxu0 0
  %870 = vmatpush1.bf16.msra.mxu0 %v799
  %871 = vmatprep.subr.bf16.mxu0 0
  %872 = vmatpush1.bf16.msra.mxu0 %v800
  %873 = vmatprep.subr.bf16.mxu0 0
  %874 = vmatpush1.bf16.msra.mxu0 %v801
  %875 = vmatprep.subr.bf16.mxu0 0
  %876 = vmatpush1.bf16.msra.mxu0 %v802
  %877 = vmatprep.subr.bf16.mxu0 0
  %878 = vmatpush1.bf16.msra.mxu0 %v803
  %879 = vmatprep.subr.bf16.mxu0 0
  %880 = vmatpush1.bf16.msra.mxu0 %v804
  %881 = vmatprep.subr.bf16.mxu0 0
  %882 = vmatpush1.bf16.msra.mxu0 %v805
  %883 = vmatprep.subr.bf16.mxu0 0
  %884 = vmatpush1.bf16.msra.mxu0 %v806
  %885 = vmatprep.subr.bf16.mxu0 0
  %886 = vmatpush1.bf16.msra.mxu0 %v807
  %887 = vmatprep.subr.bf16.mxu0 0
  %888 = vmatpush1.bf16.msra.mxu0 %v808
  %889 = vmatprep.mubr.bf16.mxu0 %v594
  %890 = vmatmul.mubr.bf16.gmra.mrb[0].mxu0 %v593
  %v891 = vpop.f32.mrb[0].mxu0
  %v892 = vadd.f32 0.0, %v891
  %v893 = vpop.f32.mrb[0].mxu0
  %v894 = vpop.f32.mrb[0].mxu0
  %v895 = vadd.f32 0.0, %v894
  %v896 = vpop.f32.mrb[0].mxu0
  %897 = vmatprep.mubr.bf16.mxu0 %v598
  %898 = vmatmul.mubr.bf16.gmra.mrb[0].mxu0 %v597
  %v899 = vpop.f32.mrb[0].mxu0
  %v900 = vadd.f32 0.0, %v899
  %v901 = vpop.f32.mrb[0].mxu0
  %v902 = vpop.f32.mrb[0].mxu0
  %v903 = vadd.f32 0.0, %v902
  %v904 = vpop.f32.mrb[0].mxu0
  %905 = vdwg.mxu0
  %906 = vmatprep.subr.bf16.mxu0 0
  %907 = vmatpush1.bf16.msra.mxu0 %v809
  %908 = vmatprep.subr.bf16.mxu0 0
  %909 = vmatpush1.bf16.msra.mxu0 %v810
  %910 = vmatprep.subr.bf16.mxu0 0
  %911 = vmatpush1.bf16.msra.mxu0 %v811
  %912 = vmatprep.subr.bf16.mxu0 0
  %913 = vmatpush1.bf16.msra.mxu0 %v812
  %914 = vmatprep.subr.bf16.mxu0 0
  %915 = vmatpush1.bf16.msra.mxu0 %v813
  %916 = vmatprep.subr.bf16.mxu0 0
  %917 = vmatpush1.bf16.msra.mxu0 %v814
  %918 = vmatprep.subr.bf16.mxu0 0
  %919 = vmatpush1.bf16.msra.mxu0 %v815
  %920 = vmatprep.subr.bf16.mxu0 0
  %921 = vmatpush1.bf16.msra.mxu0 %v816
  %922 = vmatprep.subr.bf16.mxu0 0
  %923 = vmatpush1.bf16.msra.mxu0 %v817
  %924 = vmatprep.subr.bf16.mxu0 0
  %925 = vmatpush1.bf16.msra.mxu0 %v818
  %926 = vmatprep.subr.bf16.mxu0 0
  %927 = vmatpush1.bf16.msra.mxu0 %v819
  %928 = vmatprep.subr.bf16.mxu0 0
  %929 = vmatpush1.bf16.msra.mxu0 %v820
  %930 = vmatprep.subr.bf16.mxu0 0
  %931 = vmatpush1.bf16.msra.mxu0 %v821
  %932 = vmatprep.subr.bf16.mxu0 0
  %933 = vmatpush1.bf16.msra.mxu0 %v822
  %934 = vmatprep.subr.bf16.mxu0 0
  %935 = vmatpush1.bf16.msra.mxu0 %v823
  %936 = vmatprep.subr.bf16.mxu0 0
  %937 = vmatpush1.bf16.msra.mxu0 %v824
  %938 = vmatprep.mubr.bf16.mxu0 %v596
  %939 = vmatmul.mubr.bf16.gmra.mrb[0].mxu0 %v595
  %v940 = vpop.f32.mrb[0].mxu0
  %v941 = vadd.f32 %v892, %v940
  %v942 = vpop.f32.mrb[0].mxu0
  %v943 = vpop.f32.mrb[0].mxu0
  %v944 = vadd.f32 %v895, %v943
  %v945 = vpop.f32.mrb[0].mxu0
  %946 = vmatprep.mubr.bf16.mxu0 %v600
  %947 = vmatmul.mubr.bf16.gmra.mrb[0].mxu0 %v599
  %v948 = vpop.f32.mrb[0].mxu0
  %v949 = vadd.f32 %v900, %v948
  %v950 = vpop.f32.mrb[0].mxu0
  %v951 = vpop.f32.mrb[0].mxu0
  %v952 = vadd.f32 %v903, %v951
  %v953 = vpop.f32.mrb[0].mxu0
  %954 = vdwg.mxu0
  %v955 = vld [vmem:[%s4] sm:$0xf]
  %v956 = vpack.c.bf16 %v944, %v941
  %v957 = vpack.c.bf16 %v952, %v949
  %vm958 = vcmask 261120
  %v960 = vsel %vm958, %v955, 0
  %962 = vmatprep.subr.bf16.mxu0 0
  %963 = vmatpush1.bf16.msra.mxu0 %v956
  %964 = vmatprep.subr.bf16.mxu0 0
  %965 = vmatpush1.bf16.msra.mxu0 %v957
  %966 = vmatprep.subr.bf16.mxu0 0
  %967 = vmatpush1.bf16.msra.mxu0 0
  %968 = vmatprep.subr.bf16.mxu0 0
  %969 = vmatpush1.bf16.msra.mxu0 0
  %970 = vmatprep.subr.bf16.mxu0 0
  %971 = vmatpush1.bf16.msra.mxu0 0
  %972 = vmatprep.subr.bf16.mxu0 0
  %973 = vmatpush1.bf16.msra.mxu0 0
  %974 = vmatprep.subr.bf16.mxu0 0
  %975 = vmatpush1.bf16.msra.mxu0 0
  %976 = vmatprep.subr.bf16.mxu0 0
  %977 = vmatpush1.bf16.msra.mxu0 0
  %978 = vmatprep.subr.bf16.mxu0 0
  %979 = vmatpush1.bf16.msra.mxu0 0
  %980 = vmatprep.subr.bf16.mxu0 0
  %981 = vmatpush1.bf16.msra.mxu0 0
  %982 = vmatprep.subr.bf16.mxu0 0
  %983 = vmatpush1.bf16.msra.mxu0 0
  %984 = vmatprep.subr.bf16.mxu0 0
  %985 = vmatpush1.bf16.msra.mxu0 0
  %986 = vmatprep.subr.bf16.mxu0 0
  %987 = vmatpush1.bf16.msra.mxu0 0
  %988 = vmatprep.subr.bf16.mxu0 0
  %989 = vmatpush1.bf16.msra.mxu0 0
  %990 = vmatprep.subr.bf16.mxu0 0
  %991 = vmatpush1.bf16.msra.mxu0 0
  %992 = vmatprep.subr.bf16.mxu0 0
  %993 = vmatpush1.bf16.msra.mxu0 0
  %994 = vmatprep.mubr.bf16.mxu0 0
  %995 = vmatmul.mubr.bf16.gmra.mrb[0].mxu0 %v960
  %v996 = vpop.f32.mrb[0].mxu0
  %v997 = vadd.f32 0.0, %v996
  %v998 = vpop.f32.mrb[0].mxu0
  %v999 = vpop.f32.mrb[0].mxu0
  %v1000 = vpop.f32.mrb[0].mxu0
  %1001 = vdwg.mxu0
  %v1002 = vmul.f32 %v997, 0.00390625
  %1003 = vst [vmem:[%s11] sm:$0xff] %v1002
  %v1004 = vld [vmem:[%s5] sm:$0xff]
  %v1005 = vld [vmem:[%s5 + $0x8] sm:$0xff]
  %v1006 = vld [vmem:[%s5 + $0x10] sm:$0xff]
  %v1007 = vld [vmem:[%s5 + $0x18] sm:$0xff]
  %v1008 = vld [vmem:[%s6] sm:$0x1]
  %v1010 = vlaneseq
  %v1011 = vshrl.u32 %v1010, 7
  %v1012 = vsub.s32 0, %v1011
  %v1013 = vrot.slane %v1008, %v1012
  %v1016 = vsel %vm958, %v1002, 0
  %1018 = vmatprep.subr.mxu0 0.0
  %1019 = vmatpush1.msra.mxu0 %v1004
  %1020 = vmatprep.subr.mxu0 0.0
  %1021 = vmatpush1.msra.mxu0 %v1005
  %1022 = vmatprep.subr.mxu0 0.0
  %1023 = vmatpush1.msra.mxu0 %v1006
  %1024 = vmatprep.subr.mxu0 0.0
  %1025 = vmatpush1.msra.mxu0 %v1007
  %1026 = vmatprep.subr.mxu0 0.0
  %1027 = vmatpush1.msra.mxu0 0.0
  %1028 = vmatprep.subr.mxu0 0.0
  %1029 = vmatpush1.msra.mxu0 0.0
  %1030 = vmatprep.subr.mxu0 0.0
  %1031 = vmatpush1.msra.mxu0 0.0
  %1032 = vmatprep.subr.mxu0 0.0
  %1033 = vmatpush1.msra.mxu0 0.0
  %1034 = vmatprep.subr.mxu0 0.0
  %1035 = vmatpush1.msra.mxu0 0.0
  %1036 = vmatprep.subr.mxu0 0.0
  %1037 = vmatpush1.msra.mxu0 0.0
  %1038 = vmatprep.subr.mxu0 0.0
  %1039 = vmatpush1.msra.mxu0 0.0
  %1040 = vmatprep.subr.mxu0 0.0
  %1041 = vmatpush1.msra.mxu0 0.0
  %1042 = vmatprep.subr.mxu0 0.0
  %1043 = vmatpush1.msra.mxu0 0.0
  %1044 = vmatprep.subr.mxu0 0.0
  %1045 = vmatpush1.msra.mxu0 0.0
  %1046 = vmatprep.subr.mxu0 0.0
  %1047 = vmatpush1.msra.mxu0 0.0
  %1048 = vmatprep.subr.mxu0 0.0
  %1049 = vmatpush1.msra.mxu0 0.0
  %1050 = vmatprep.subr.mxu0 0.0
  %1051 = vmatpush1.msra.mxu0 0.0
  %1052 = vmatprep.subr.mxu0 0.0
  %1053 = vmatpush1.msra.mxu0 0.0
  %1054 = vmatprep.subr.mxu0 0.0
  %1055 = vmatpush1.msra.mxu0 0.0
  %1056 = vmatprep.subr.mxu0 0.0
  %1057 = vmatpush1.msra.mxu0 0.0
  %1058 = vmatprep.subr.mxu0 0.0
  %1059 = vmatpush1.msra.mxu0 0.0
  %1060 = vmatprep.subr.mxu0 0.0
  %1061 = vmatpush1.msra.mxu0 0.0
  %1062 = vmatprep.subr.mxu0 0.0
  %1063 = vmatpush1.msra.mxu0 0.0
  %1064 = vmatprep.subr.mxu0 0.0
  %1065 = vmatpush1.msra.mxu0 0.0
  %1066 = vmatprep.subr.mxu0 0.0
  %1067 = vmatpush1.msra.mxu0 0.0
  %1068 = vmatprep.subr.mxu0 0.0
  %1069 = vmatpush1.msra.mxu0 0.0
  %1070 = vmatprep.subr.mxu0 0.0
  %1071 = vmatpush1.msra.mxu0 0.0
  %1072 = vmatprep.subr.mxu0 0.0
  %1073 = vmatpush1.msra.mxu0 0.0
  %1074 = vmatprep.subr.mxu0 0.0
  %1075 = vmatpush1.msra.mxu0 0.0
  %1076 = vmatprep.subr.mxu0 0.0
  %1077 = vmatpush1.msra.mxu0 0.0
  %1078 = vmatprep.subr.mxu0 0.0
  %1079 = vmatpush1.msra.mxu0 0.0
  %1080 = vmatprep.subr.mxu0 0.0
  %1081 = vmatpush1.msra.mxu0 0.0
  %1082 = vmatprep.mubr.f32.mxu0 0.0
  %1083 = vmatmul.mubr.f32.gmra.mrb[0].mxu0 %v1016
  %v1084 = vpop.f32.mrb[0].mxu0
  %v1085 = vadd.f32 %v1013, %v1084
  %v1086 = vpop.f32.mrb[0].mxu0
  %1087 = vdwg.mxu0
  %vm1088 = vcmask 517120
  %v1089 = vsel %vm1088, %v1085, 0.0
  %v1090 = vrot.slane %v1089, 4
  %v1091 = vadd.f32 %v1089, %v1090
  %v1092 = vrot.slane %v1091, 2
  %v1093 = vadd.f32 %v1091, %v1092
  %v1094 = vrot.slane %v1093, 1
  %v1095 = vadd.f32 %v1093, %v1094
  %v1096 = vmul.f32 %v1095, 0.5
  %v1097 = vsub.f32 %v1085, %v1096
  %v1098 = vmul.f32 %v1097, %v1097
  %v1099 = vsel %vm1088, %v1098, 0.0
  %v1100 = vrot.slane %v1099, 4
  %v1101 = vadd.f32 %v1099, %v1100
  %v1102 = vrot.slane %v1101, 2
  %v1103 = vadd.f32 %v1101, %v1102
  %v1104 = vrot.slane %v1103, 1
  %v1105 = vadd.f32 %v1103, %v1104
  %v1106 = vmul.f32 %v1105, 0.5
  %v1107 = vadd.f32 %v1106, 1e-05
  %v1108 = vrsqrt.pop %v1107
  %v1109 = vmul.f32 %v1097, %v1108
  %v1110 = vld [vmem:[%s7] sm:$0x1]
  %v1112 = vlaneseq
  %v1113 = vshrl.u32 %v1112, 7
  %v1114 = vsub.s32 0, %v1113
  %v1115 = vrot.slane %v1110, %v1114
  %v1117 = vmul.f32 %v1109, %v1115
  %v1118 = vld [vmem:[%s8] sm:$0x1]
  %v1120 = vlaneseq
  %v1121 = vshrl.u32 %v1120, 7
  %v1122 = vsub.s32 0, %v1121
  %v1123 = vrot.slane %v1118, %v1122
  %v1125 = vadd.f32 %v1117, %v1123
  %v1126 = vmax.f32 %v1125, 0.0
  %v1127 = vpack.c.bf16 %v1126, %v1126
  %v1128 = vld [vmem:[%s9] sm:$0xff]
  %v1129 = vld [vmem:[%s9 + $0x8] sm:$0xff]
  %v1130 = vld [vmem:[%s9 + $0x10] sm:$0xff]
  %v1131 = vld [vmem:[%s9 + $0x18] sm:$0xff]
  %v1132 = vld [vmem:[%s9 + $0x20] sm:$0xff]
  %v1133 = vld [vmem:[%s9 + $0x28] sm:$0xff]
  %v1134 = vld [vmem:[%s9 + $0x30] sm:$0xff]
  %v1135 = vld [vmem:[%s9 + $0x38] sm:$0xff]
  %v1136 = vpack.c.bf16 %v1129, %v1128
  %v1137 = vpack.c.bf16 %v1131, %v1130
  %v1138 = vpack.c.bf16 %v1133, %v1132
  %v1139 = vpack.c.bf16 %v1135, %v1134
  %v1140 = vld [vmem:[%s10] sm:$0x1]
  %v1142 = vlaneseq
  %v1143 = vshrl.u32 %v1142, 7
  %v1144 = vsub.s32 0, %v1143
  %v1145 = vrot.slane %v1140, %v1144
  %vm1147 = vcmask 523264
  %v1149 = vsel %vm1147, %v1127, 0
  %1151 = vmatprep.subr.bf16.mxu0 0
  %1152 = vmatpush1.bf16.msra.mxu0 %v1136
  %1153 = vmatprep.subr.bf16.mxu0 0
  %1154 = vmatpush1.bf16.msra.mxu0 %v1137
  %1155 = vmatprep.subr.bf16.mxu0 0
  %1156 = vmatpush1.bf16.msra.mxu0 %v1138
  %1157 = vmatprep.subr.bf16.mxu0 0
  %1158 = vmatpush1.bf16.msra.mxu0 %v1139
  %1159 = vmatprep.subr.bf16.mxu0 0
  %1160 = vmatpush1.bf16.msra.mxu0 0
  %1161 = vmatprep.subr.bf16.mxu0 0
  %1162 = vmatpush1.bf16.msra.mxu0 0
  %1163 = vmatprep.subr.bf16.mxu0 0
  %1164 = vmatpush1.bf16.msra.mxu0 0
  %1165 = vmatprep.subr.bf16.mxu0 0
  %1166 = vmatpush1.bf16.msra.mxu0 0
  %1167 = vmatprep.subr.bf16.mxu0 0
  %1168 = vmatpush1.bf16.msra.mxu0 0
  %1169 = vmatprep.subr.bf16.mxu0 0
  %1170 = vmatpush1.bf16.msra.mxu0 0
  %1171 = vmatprep.subr.bf16.mxu0 0
  %1172 = vmatpush1.bf16.msra.mxu0 0
  %1173 = vmatprep.subr.bf16.mxu0 0
  %1174 = vmatpush1.bf16.msra.mxu0 0
  %1175 = vmatprep.subr.bf16.mxu0 0
  %1176 = vmatpush1.bf16.msra.mxu0 0
  %1177 = vmatprep.subr.bf16.mxu0 0
  %1178 = vmatpush1.bf16.msra.mxu0 0
  %1179 = vmatprep.subr.bf16.mxu0 0
  %1180 = vmatpush1.bf16.msra.mxu0 0
  %1181 = vmatprep.subr.bf16.mxu0 0
  %1182 = vmatpush1.bf16.msra.mxu0 0
  %1183 = vmatprep.mubr.bf16.mxu0 0
  %1184 = vmatmul.mubr.bf16.gmra.mrb[0].mxu0 %v1149
  %v1185 = vpop.f32.mrb[0].mxu0
  %v1186 = vadd.f32 %v1145, %v1185
  %v1187 = vpop.f32.mrb[0].mxu0
  %v1188 = vpop.f32.mrb[0].mxu0
  %v1189 = vpop.f32.mrb[0].mxu0
  %1190 = vdwg.mxu0
  %vm1191 = vcmask 130048
  %1192 = vst.msk [vmem:[%s12] sm:$0xff] %vm1191, %v1186
  // Predicated region
  $region46: #{net_wrapper_forward.1} parent=0 // pred_check
    _
  $region47: #{net_wrapper_forward.1} parent=0 // pred_check_branch
    %1194 = sbr.rel (0) target = $region49
  $region48: #{net_wrapper_forward.1} parent=0 // pred_region
    _
  $region49: #{net_wrapper_forward.1} parent=0 // pred_fallthru
    _
  // Predicated region
  $region50: #{net_wrapper_forward.1} parent=0 // pred_check
    _
  $region51: #{net_wrapper_forward.1} parent=0 // pred_check_branch
    %1196 = sbr.rel (0) target = $region53
  $region52: #{net_wrapper_forward.1} parent=0 // pred_region
    _
  $region53: #{net_wrapper_forward.1} parent=0 // pred_fallthru
    _
  // Predicated region
  $region54: #{net_wrapper_forward.1} parent=0 // pred_check
    _
  $region55: #{net_wrapper_forward.1} parent=0 // pred_check_branch
    %1198 = sbr.rel (0) target = $region57
  $region56: #{net_wrapper_forward.1} parent=0 // pred_region
    _
  $region57: #{net_wrapper_forward.1} parent=0 // pred_fallthru
    _
  // Predicated region
  $region58: #{net_wrapper_forward.1} parent=0 // pred_check
    _
  $region59: #{net_wrapper_forward.1} parent=0 // pred_check_branch
    %1200 = sbr.rel (0) target = $region61
  $region60: #{net_wrapper_forward.1} parent=0 // pred_region
    _
  $region61: #{net_wrapper_forward.1} parent=0 // pred_fallthru
    _

</llo_original>
